<compile_context>
chip_gen: v6e
topology: v6e:2x2x1
jax: 0.10.0
libtpu: 0.0.40
codegen_flags: <defaults>
</compile_context>

<pallas_src>
import functools

import jax
import jax.numpy as jnp
from jax import lax
from jax.experimental import pallas as pl
from jax.experimental.pallas import tpu as pltpu


def nnue_kernel(x_ref, w1_ref, w2_ref, o_ref, *, precision):
    # fc1 on the MXU: x [tb, in] . w1 [hidden, in] contracted over `in`
    # -> [tb, hidden], f32 accumulation.  No transpose materialized anywhere.
    h = lax.dot_general(
        x_ref[...], w1_ref[...],
        dimension_numbers=(((1,), (1,)), ((), ())),
        preferred_element_type=jnp.float32,
        precision=precision)
    h = jnp.maximum(h, 0.0)                       # ReLU (VPU), f32

    # fc2 with output_size == 1: w2 [1, hidden] . h [tb, hidden] contracted
    # over hidden -> a lane-dense [1, tb] row (unmasked vst on the store,
    # instead of a 1/128-lane masked column store).  M=1 matmul is ~free.
    y = lax.dot_general(
        w2_ref[...], h,
        dimension_numbers=(((1,), (1,)), ((), ())),
        preferred_element_type=jnp.float32,
        precision=precision)
    o_ref[...] = y.astype(o_ref.dtype)


def _choose_batch_tile(B, requested):
    """Pick the batch tile (static, shape-derived).

    Constraints / preferences:
      * multiple of 128 rows (lane-dense [1, tile] output block),
      * <= ~B/2 when possible so the "parallel" grid has >= 2 steps
        (v7x megacore: both TensorCores get work),
      * an exact divisor of B near the request when one exists, so the
        full-x pad copy is skipped for ragged batches.
    """
    requested = max(128, (requested // 128) * 128)
    requested = min(requested, pl.cdiv(B, 128) * 128)   # never bigger than padded B
    half = ((B // 2) // 128) * 128
    if half >= 128:
        requested = min(requested, half)                # keep >= 2 grid steps
    tile = requested
    while tile >= 128:
        if B % tile == 0:
            return tile                                 # divisor -> no pad copy
        if tile <= requested // 2:
            break
        tile -= 128
    return requested


@functools.partial(
    jax.jit, static_argnames=("batch_tile", "compute_dtype", "precision"))
def nnue_forward(x, w1, w2, *, batch_tile=1024, compute_dtype=None,
                 precision=None):
    """x: [B, input] f32; w1: [hidden, input] f32; w2: [1, hidden] f32.

    Returns [B, 1] f32, matching relu(x @ w1.T) @ w2.T.
    compute_dtype=jnp.bfloat16 opts into bf16 x/W1 (halves x HBM traffic).
    """
    B, in_size = x.shape
    hidden, in_size_w = w1.shape
    out_size, hidden_w = w2.shape
    assert in_size == in_size_w and hidden == hidden_w
    assert out_size == 1, "kernel specializes the NNUE output_size == 1 case"

    if compute_dtype is not None:
        x = x.astype(compute_dtype)
        w1 = w1.astype(compute_dtype)
    w2 = w2.astype(jnp.float32)

    tile = _choose_batch_tile(B, batch_tile)
    num_tiles = pl.cdiv(B, tile)
    b_pad = num_tiles * tile
    if b_pad != B:
        # TODO(synk): a masked second call for the ragged tail would avoid this
        # full-x copy; _choose_batch_tile already skips it whenever a divisor
        # tile exists near the requested size.
        x = jnp.pad(x, ((0, b_pad - B), (0, 0)))  # zero rows -> zero outputs

    kernel = functools.partial(nnue_kernel, precision=precision)
    out = pl.pallas_call(
        kernel,
        out_shape=jax.ShapeDtypeStruct((1, b_pad), jnp.float32),
        grid_spec=pltpu.PrefetchScalarGridSpec(
            num_scalar_prefetch=0,
            grid=(num_tiles,),
            in_specs=[
                # x: one batch tile per grid step.
                pl.BlockSpec((tile, in_size), lambda i: (i, 0)),
                # weights: constant block index -> stay VMEM-resident across
                # the whole grid (fetched once, not per tile).
                pl.BlockSpec((hidden, in_size), lambda i: (0, 0)),
                pl.BlockSpec((out_size, hidden), lambda i: (0, 0)),
            ],
            # lane-dense output row: each grid step writes a [1, tile] slice.
            out_specs=pl.BlockSpec((1, tile), lambda i: (0, i)),
        ),
        compiler_params=pltpu.CompilerParams(
            dimension_semantics=("parallel",)),
    )(x, w1, w2)
    return out[0, :B][:, None]


def torch_linear_init(key, out_features, in_features):
    # Deterministic stand-in for nn.Linear's kaiming-uniform init:
    # U(-1/sqrt(in), 1/sqrt(in)), weight shape [out, in].
    bound = 1.0 / jnp.sqrt(jnp.float32(in_features))
    return jax.random.uniform(
        key, (out_features, in_features), dtype=jnp.float32,
        minval=-bound, maxval=bound)


if __name__ == "__main__":
    input_size, hidden_size, output_size = 768, 128, 1
    batch = 256        # tile chooser -> 128-row tiles, 2 parallel grid steps

    key = jax.random.PRNGKey(0)
    kx, k1, k2 = jax.random.split(key, 3)

    x = jax.random.normal(kx, (batch, input_size), dtype=jnp.float32)
    w1 = torch_linear_init(k1, hidden_size, input_size)   # fc1.weight [128, 768]
    w2 = torch_linear_init(k2, output_size, hidden_size)  # fc2.weight [1, 128]

    # Pure-JAX reference of the same semantics.
    ref = jnp.maximum(x @ w1.T, 0.0) @ w2.T

    # Default f32 path (matches the PyTorch module numerics).
    y = nnue_forward(x, w1, w2)
    jax.block_until_ready(y)
    assert y.shape == (batch, output_size)
    assert jnp.allclose(y, ref, atol=1e-4, rtol=1e-4), float(
        jnp.max(jnp.abs(y - ref)))

    # Opt-in bf16 x/W1 path (halves the dominant x DMA); looser tolerance.
    y_bf16 = nnue_forward(x, w1, w2, compute_dtype=jnp.bfloat16)
    jax.block_until_ready(y_bf16)
    assert jnp.allclose(y_bf16, ref, atol=5e-2, rtol=5e-2), float(
        jnp.max(jnp.abs(y_bf16 - ref)))

    print("KERNEL_OK")
</pallas_src>

<mosaic_0001>
module attributes {stable_mosaic.version = 11 : i64} {
  func.func @nnue_kernel(%arg0: i32, %arg1: memref<128x768xf32, #tpu.memory_space<vmem>>, %arg2: memref<128x768xf32, #tpu.memory_space<vmem>>, %arg3: memref<1x128xf32, #tpu.memory_space<vmem>>, %arg4: memref<1x128xf32, #tpu.memory_space<vmem>>) attributes {dimension_semantics = [#tpu.dimension_semantics<parallel>], iteration_bounds = array<i64: 2>, scalar_prefetch = 0 : i64, scratch_operands = 0 : i64, tpu.core_type = #tpu.core_type<tc>, window_params = [{transform_indices = @transform_0, window_bounds = array<i64: 128, 768>}, {pipeline_mode = #tpu.pipeline_mode<synchronous>, transform_indices = @transform_1, window_bounds = array<i64: 128, 768>}, {pipeline_mode = #tpu.pipeline_mode<synchronous>, transform_indices = @transform_2, window_bounds = array<i64: 1, 128>}, {transform_indices = @transform_3, window_bounds = array<i64: 1, 128>}]} {
    %c0 = arith.constant 0 : index
    %c0_0 = arith.constant 0 : index
    %0 = vector.load %arg1[%c0, %c0_0] : memref<128x768xf32, #tpu.memory_space<vmem>>, vector<128x768xf32>
    %c0_1 = arith.constant 0 : index
    %c0_2 = arith.constant 0 : index
    %1 = vector.load %arg2[%c0_1, %c0_2] : memref<128x768xf32, #tpu.memory_space<vmem>>, vector<128x768xf32>
    %cst = arith.constant dense<0.000000e+00> : vector<128x128xf32>
    %2 = tpu.matmul %0, %1, %cst {dimension_numbers = #tpu.dot_dimension_numbers<[1], [1], [0], [0], [0, 0, 1, 0], [], []>} : vector<128x768xf32>, vector<128x768xf32>, vector<128x128xf32> -> vector<128x128xf32>
    %cst_3 = arith.constant 0.000000e+00 : f32
    %3 = vector.broadcast %cst_3 : f32 to vector<128x128xf32>
    %4 = arith.maximumf %2, %3 : vector<128x128xf32>
    %c0_4 = arith.constant 0 : index
    %c0_5 = arith.constant 0 : index
    %5 = vector.load %arg3[%c0_4, %c0_5] : memref<1x128xf32, #tpu.memory_space<vmem>>, vector<1x128xf32>
    %cst_6 = arith.constant dense<0.000000e+00> : vector<1x128xf32>
    %6 = tpu.matmul %5, %4, %cst_6 {dimension_numbers = #tpu.dot_dimension_numbers<[1], [1], [0], [0], [0, 0, 1, 0], [], []>} : vector<1x128xf32>, vector<128x128xf32>, vector<1x128xf32> -> vector<1x128xf32>
    %c0_7 = arith.constant 0 : index
    %c0_8 = arith.constant 0 : index
    %7 = vector.load %arg4[%c0_7, %c0_8] : memref<1x128xf32, #tpu.memory_space<vmem>>, vector<1x128xf32>
    tpu.vector_store %arg4[%c0_7, %c0_8], %6 {strides = array<i32>} : memref<1x128xf32, #tpu.memory_space<vmem>>, vector<1x128xf32>,
    return
  }
  func.func @transform_0(%arg0: i32) -> (i32, i32) {
    %c0_i32 = arith.constant 0 : i32
    %c0_i32_0 = arith.constant 0 : i32
    return %arg0, %c0_i32 : i32, i32
  }
  func.func @transform_1(%arg0: i32) -> (i32, i32) {
    %c0_i32 = arith.constant 0 : i32
    %c0_i32_0 = arith.constant 0 : i32
    %c0_i32_1 = arith.constant 0 : i32
    return %c0_i32, %c0_i32_0 : i32, i32
  }
  func.func @transform_2(%arg0: i32) -> (i32, i32) {
    %c0_i32 = arith.constant 0 : i32
    %c0_i32_0 = arith.constant 0 : i32
    %c0_i32_1 = arith.constant 0 : i32
    return %c0_i32, %c0_i32_0 : i32, i32
  }
  func.func @transform_3(%arg0: i32) -> (i32, i32) {
    %c0_i32 = arith.constant 0 : i32
    %c0_i32_0 = arith.constant 0 : i32
    return %c0_i32, %arg0 : i32, i32
  }
}

</mosaic_0001>

<llo_original>
// kernel: nnue_forward.1
$region0: #{nnue_forward.1}
  #allocation0 [shape = 'u32[]', space=smem, size = 0x4, offset = 0x4, fixed_abs, tag = 'smem constant byte address 0x4 - core index']
  #allocation1 [shape = 'u32[144,128]{1,0:T(1,128)}', space=vmem, size = 0x12000, scoped, tag = 'internal scratch']
  %s0 = inlined_call_operand.hbm [shape: f32[256,768], index: 0, kind: input, shape index: {}]
  %s1 = inlined_call_operand.hbm [shape: f32[128,768], index: 1, kind: input, shape index: {}]
  %s2 = inlined_call_operand.vmem [shape: f32[1,128], index: 2, kind: input, shape index: {}]
  %s3 = inlined_call_operand.hbm [shape: f32[1,256], index: 3, kind: output, shape index: {}]
  %s4 = sld [smem:[#allocation0]]
  $region53: #{nnue_forward.1} parent=0
    _
  %s6 = ssub.s32 1, %s4
  %s7 = scalar_select 0, %s6, %s4
  $region1: #{nnue_forward.1} parent=0
    #allocation2 [shape = 'u8[786432]{0}', space=vmem, size = 0xc0000, scoped, tag = 'input window, operand 0']
    #allocation3 [shape = 's32[2]{0}', space=sflag, size = 0x8, scoped, tag = 'scoped memory for nnue_forward.1']
    #allocation4 [shape = 's32[2]{0}', space=sflag, size = 0x8, scoped, tag = 'scoped memory for nnue_forward.1']
    #allocation5 [shape = 'u8[393216]{0}', space=vmem, size = 0x60000, scoped, tag = 'input window, operand 1, single buffered']
    #allocation6 [shape = 's32[1]{0}', space=sflag, size = 0x4, scoped, tag = 'scoped memory for nnue_forward.1']
    #allocation7 [shape = 'u8[1024]{0}', space=vmem, size = 0x400, scoped, tag = 'output window, operand 0']
    %8 = vsyncpa [#allocation3], 0
    %s9 = scalar_lea.sflag [#allocation3], 1
    %10 = vsyncpa %s9, 0
    %11 = vsyncpa [#allocation6], 0
    %12 = vsyncpa [#allocation4], 0
    %s13 = scalar_lea.sflag [#allocation4], 1
    %14 = vsyncpa %s13, 0
    loop: start=0, step=1, limit=4
    $region2: #{nnue_forward.1} parent=1 // loop_pre_header
      _
    $region3: #{nnue_forward.1} parent=1 // loop_header
      %s16 = sphi 0, %s20
      %p17 = scmp.ge.s32.totalorder %s16, 4
      %s26 = sphi 0, %s28
      %s29 = sphi 0, %s26
      %s30 = sphi 0, %s29
      %s46 = sphi 0, %s30
      %s50 = sphi 0, %s50
      %s52 = sphi 0, %s50
      %s53 = sphi 0, %s52
      %s67 = sphi 0, %s53
      %s71 = sphi 0, %s71
      %s73 = sphi 0, %s71
      %s74 = sphi 0, %s73
      %s88 = sphi 0, %s74
      %s94 = sphi 0, %s96
      %s97 = sphi 0, %s94
      %s98 = sphi 0, %s97
      %s114 = sphi 0, %s98
    $region4: #{nnue_forward.1} parent=1 // loop_header_branch
      %19 = sbr.rel (%p17) target = $region8
    $region5: #{nnue_forward.1} parent=1 // loop_body
      %s21 = ssub.s32 %s16, 1
      %s22 = ssub.s32 %s16, 2
      %s23 = sadd.s32 %s16, 1
      %s24 = ssub.s32 %s16, %s23
      %p25 = scmp.eq.s32.totalorder %s24, 0
      %s27 = sadd.s32 %s26, 1
      %s28 = scalar_select %p25, %s26, %s27
      %p31 = pneg %p25
      %p32 = scmp.eq.s32.totalorder %s16, 1
      %p33 = por %p31, %p32
      %p34 = scmp.ne.s32.totalorder %s26, %s29
      %p35 = scmp.eq.s32.totalorder %s16, 0
      %p36 = por %p34, %p35
      %p37 = scmp.ne.s32.totalorder %s26, %s29
      %p38 = scmp.eq.s32.totalorder %s21, 1
      %p39 = por %p37, %p38
      %p40 = scmp.ne.s32.totalorder %s29, %s30
      %p41 = scmp.eq.s32.totalorder %s21, 0
      %p42 = por %p40, %p41
      %p43 = scmp.ne.s32.totalorder %s29, %s30
      %p44 = scmp.eq.s32.totalorder %s22, 1
      %p45 = por %p43, %p44
      %p47 = scmp.ne.s32.totalorder %s30, %s46
      %p48 = scmp.eq.s32.totalorder %s22, 0
      %p49 = por %p47, %p48
      %s51 = sadd.s32 %s50, 1
      %p54 = scmp.eq.s32.totalorder %s16, 1
      %p55 = scmp.ne.s32.totalorder %s50, %s52
      %p56 = scmp.eq.s32.totalorder %s16, 0
      %p57 = por %p55, %p56
      %p58 = scmp.ne.s32.totalorder %s50, %s52
      %p59 = scmp.eq.s32.totalorder %s21, 1
      %p60 = por %p58, %p59
      %p61 = scmp.ne.s32.totalorder %s52, %s53
      %p62 = scmp.eq.s32.totalorder %s21, 0
      %p63 = por %p61, %p62
      %p64 = scmp.ne.s32.totalorder %s52, %s53
      %p65 = scmp.eq.s32.totalorder %s22, 1
      %p66 = por %p64, %p65
      %p68 = scmp.ne.s32.totalorder %s53, %s67
      %p69 = scmp.eq.s32.totalorder %s22, 0
      %p70 = por %p68, %p69
      %s72 = sadd.s32 %s71, 1
      %p75 = scmp.eq.s32.totalorder %s16, 1
      %p76 = scmp.ne.s32.totalorder %s71, %s73
      %p77 = scmp.eq.s32.totalorder %s16, 0
      %p78 = por %p76, %p77
      %p79 = scmp.ne.s32.totalorder %s71, %s73
      %p80 = scmp.eq.s32.totalorder %s21, 1
      %p81 = por %p79, %p80
      %p82 = scmp.ne.s32.totalorder %s73, %s74
      %p83 = scmp.eq.s32.totalorder %s21, 0
      %p84 = por %p82, %p83
      %p85 = scmp.ne.s32.totalorder %s73, %s74
      %p86 = scmp.eq.s32.totalorder %s22, 1
      %p87 = por %p85, %p86
      %p89 = scmp.ne.s32.totalorder %s74, %s88
      %p90 = scmp.eq.s32.totalorder %s22, 0
      %p91 = por %p89, %p90
      %s92 = ssub.s32 %s16, %s23
      %p93 = scmp.eq.s32.totalorder %s92, 0
      %s95 = sadd.s32 %s94, 1
      %s96 = scalar_select %p93, %s94, %s95
      %p99 = pneg %p93
      %p100 = scmp.eq.s32.totalorder %s16, 1
      %p101 = por %p99, %p100
      %p102 = scmp.ne.s32.totalorder %s94, %s97
      %p103 = scmp.eq.s32.totalorder %s16, 0
      %p104 = por %p102, %p103
      %p105 = scmp.ne.s32.totalorder %s94, %s97
      %p106 = scmp.eq.s32.totalorder %s21, 1
      %p107 = por %p105, %p106
      %p108 = scmp.ne.s32.totalorder %s97, %s98
      %p109 = scmp.eq.s32.totalorder %s21, 0
      %p110 = por %p108, %p109
      %p111 = scmp.ne.s32.totalorder %s97, %s98
      %p112 = scmp.eq.s32.totalorder %s22, 1
      %p113 = por %p111, %p112
      %p115 = scmp.ne.s32.totalorder %s98, %s114
      %p116 = scmp.eq.s32.totalorder %s22, 0
      %p117 = por %p115, %p116
      %p118 = scmp.le.s32.totalorder 1, %s16
      %p119 = scmp.lt.s32.totalorder %s16, 3
      %p120 = pnand %p118, %p119
      %p121 = pneg %p120
      // Predicated region
      $region9: #{nnue_forward.1} parent=5 // pred_check
        _
      $region10: #{nnue_forward.1} parent=5 // pred_check_branch
        %123 = sbr.rel (%p120) target = $region12
      $region11: #{nnue_forward.1} parent=5 // pred_region
        %s124 = ssub.s32 %s16, 1
        // Predicated region
        $region13: #{nnue_forward.1} parent=11 // pred_check
          %p125 = pneg %p63
        $region14: #{nnue_forward.1} parent=11 // pred_check_branch
          %127 = sbr.rel (%p125) target = $region16
        $region15: #{nnue_forward.1} parent=11 // pred_region
          %s129 = ssub.s32 12288, 12288
          %130 = vsyncadd [#allocation6], %s129
          %s131 = sshll.u32 [#allocation5], 4
          %s132 = int_to_ptr.vmem [resolvable:$true] %s131
          %137 = dma.hbm_to_vmem [thread:$0]  %s1, 12288, %s132, [#allocation6], 768, 768, 48
        $region16: #{nnue_forward.1} parent=11 // pred_fallthru
          _
        // Predicated region
        $region17: #{nnue_forward.1} parent=11 // pred_check
          %p138 = pneg %p84
        $region18: #{nnue_forward.1} parent=11 // pred_check_branch
          %140 = sbr.rel (%p138) target = $region20
        $region19: #{nnue_forward.1} parent=11 // pred_region
          _
        $region20: #{nnue_forward.1} parent=11 // pred_fallthru
          _
      $region12: #{nnue_forward.1} parent=5 // pred_fallthru
        _
      %p141 = scmp.lt.s32.totalorder %s16, 2
      // Predicated region
      $region21: #{nnue_forward.1} parent=5 // pred_check
        %p142 = pneg %p141
      $region22: #{nnue_forward.1} parent=5 // pred_check_branch
        %144 = sbr.rel (%p142) target = $region24
      $region23: #{nnue_forward.1} parent=5 // pred_region
        // Predicated region
        $region25: #{nnue_forward.1} parent=23 // pred_check
          %p145 = pneg %p36
        $region26: #{nnue_forward.1} parent=23 // pred_check_branch
          %147 = sbr.rel (%p145) target = $region28
        $region27: #{nnue_forward.1} parent=23 // pred_region
          %s148 = sand.u32 %s26, 1
          %s149 = scalar_lea.sflag [#allocation3], %s148
          %s150 = sand.u32 %s26, 1
          %s151 = smul.addr %s150, 768
          %s152 = scalar_lea.vmem [#allocation2], %s151
          %s153 = smul.u32 16, %s16
          %s155 = ssub.s32 12288, 12288
          %156 = vsyncadd %s149, %s155
          %s157 = smul.addr %s153, 6
          %s158 = smul.addr %s157, 128
          %s159 = scalar_lea.hbm %s0, %s158
          %s160 = sshll.u32 %s152, 4
          %s161 = int_to_ptr.vmem [resolvable:$true] %s160
          %166 = dma.hbm_to_vmem [thread:$0]  %s159, 12288, %s161, %s149, 768, 768, 48
        $region28: #{nnue_forward.1} parent=23 // pred_fallthru
          _
      $region24: #{nnue_forward.1} parent=5 // pred_fallthru
        _
      %p167 = scmp.le.s32.totalorder 1, %s16
      %p168 = scmp.lt.s32.totalorder %s16, 3
      %p169 = pnand %p167, %p168
      %p170 = pneg %p169
      // Predicated region
      $region29: #{nnue_forward.1} parent=5 // pred_check
        _
      $region30: #{nnue_forward.1} parent=5 // pred_check_branch
        %172 = sbr.rel (%p169) target = $region32
      $region31: #{nnue_forward.1} parent=5 // pred_region
        %s173 = ssub.s32 %s16, 1
        %s174 = sand.u32 %s29, 1
        %s175 = scalar_lea.sflag [#allocation3], %s174
        %s176 = sand.u32 %s29, 1
        %s177 = smul.addr %s176, 768
        %s178 = scalar_lea.vmem [#allocation2], %s177
        // Predicated region
        $region33: #{nnue_forward.1} parent=31 // pred_check
          %p179 = pneg %p42
        $region34: #{nnue_forward.1} parent=31 // pred_check_branch
          %181 = sbr.rel (%p179) target = $region36
        $region35: #{nnue_forward.1} parent=31 // pred_region
          %182 = dma.done %s175, 12288
        $region36: #{nnue_forward.1} parent=31 // pred_fallthru
          _
        // Predicated region
        $region37: #{nnue_forward.1} parent=31 // pred_check
          %p183 = pneg %p63
        $region38: #{nnue_forward.1} parent=31 // pred_check_branch
          %185 = sbr.rel (%p183) target = $region40
        $region39: #{nnue_forward.1} parent=31 // pred_region
          %186 = dma.done [#allocation6], 12288
        $region40: #{nnue_forward.1} parent=31 // pred_fallthru
          _
        %s187 = sand.u32 %s29, 1
        %s188 = scalar_lea.sflag [#allocation3], %s187
        %s189 = sand.u32 %s29, 1
        %s190 = smul.addr %s189, 768
        %s191 = scalar_lea.vmem [#allocation2], %s190
        %p192 = pneg %p42
        %p193 = pneg %p39
        %p194 = pneg %p63
        %p195 = pneg %p60
        %p196 = pneg %p84
        %p197 = pneg %p81
        %p198 = pneg %p110
        %p199 = pneg %p107
        %s200 = sand.u32 %s97, 1
        %s201 = scalar_lea.sflag [#allocation4], %s200
        %s202 = sand.u32 %s97, 1
        %s203 = scalar_lea.vmem [#allocation7], %s202
        %s204 = smul.u32 16, %s21
        %v205 = vld [vmem:[%s178] sm:$0xff]
        %v206 = vld [vmem:[%s178 + $0x8] sm:$0xff]
        %v207 = vld [vmem:[%s178 + $0x10] sm:$0xff]
        %v208 = vld [vmem:[%s178 + $0x18] sm:$0xff]
        %v209 = vld [vmem:[%s178 + $0x20] sm:$0xff]
        %v210 = vld [vmem:[%s178 + $0x28] sm:$0xff]
        %v211 = vld [vmem:[%s178 + $0x30] sm:$0xff]
        %v212 = vld [vmem:[%s178 + $0x38] sm:$0xff]
        %v213 = vld [vmem:[%s178 + $0x40] sm:$0xff]
        %v214 = vld [vmem:[%s178 + $0x48] sm:$0xff]
        %v215 = vld [vmem:[%s178 + $0x50] sm:$0xff]
        %v216 = vld [vmem:[%s178 + $0x58] sm:$0xff]
        %v217 = vld [vmem:[%s178 + $0x60] sm:$0xff]
        %v218 = vld [vmem:[%s178 + $0x68] sm:$0xff]
        %v219 = vld [vmem:[%s178 + $0x70] sm:$0xff]
        %v220 = vld [vmem:[%s178 + $0x78] sm:$0xff]
        %v221 = vld [vmem:[%s178 + $0x80] sm:$0xff]
        %v222 = vld [vmem:[%s178 + $0x88] sm:$0xff]
        %v223 = vld [vmem:[%s178 + $0x90] sm:$0xff]
        %v224 = vld [vmem:[%s178 + $0x98] sm:$0xff]
        %v225 = vld [vmem:[%s178 + $0xa0] sm:$0xff]
        %v226 = vld [vmem:[%s178 + $0xa8] sm:$0xff]
        %v227 = vld [vmem:[%s178 + $0xb0] sm:$0xff]
        %v228 = vld [vmem:[%s178 + $0xb8] sm:$0xff]
        %v229 = vld [vmem:[%s178 + $0xc0] sm:$0xff]
        %v230 = vld [vmem:[%s178 + $0xc8] sm:$0xff]
        %v231 = vld [vmem:[%s178 + $0xd0] sm:$0xff]
        %v232 = vld [vmem:[%s178 + $0xd8] sm:$0xff]
        %v233 = vld [vmem:[%s178 + $0xe0] sm:$0xff]
        %v234 = vld [vmem:[%s178 + $0xe8] sm:$0xff]
        %v235 = vld [vmem:[%s178 + $0xf0] sm:$0xff]
        %v236 = vld [vmem:[%s178 + $0xf8] sm:$0xff]
        %v237 = vld [vmem:[%s178 + $0x100] sm:$0xff]
        %v238 = vld [vmem:[%s178 + $0x108] sm:$0xff]
        %v239 = vld [vmem:[%s178 + $0x110] sm:$0xff]
        %v240 = vld [vmem:[%s178 + $0x118] sm:$0xff]
        %v241 = vld [vmem:[%s178 + $0x120] sm:$0xff]
        %v242 = vld [vmem:[%s178 + $0x128] sm:$0xff]
        %v243 = vld [vmem:[%s178 + $0x130] sm:$0xff]
        %v244 = vld [vmem:[%s178 + $0x138] sm:$0xff]
        %v245 = vld [vmem:[%s178 + $0x140] sm:$0xff]
        %v246 = vld [vmem:[%s178 + $0x148] sm:$0xff]
        %v247 = vld [vmem:[%s178 + $0x150] sm:$0xff]
        %v248 = vld [vmem:[%s178 + $0x158] sm:$0xff]
        %v249 = vld [vmem:[%s178 + $0x160] sm:$0xff]
        %v250 = vld [vmem:[%s178 + $0x168] sm:$0xff]
        %v251 = vld [vmem:[%s178 + $0x170] sm:$0xff]
        %v252 = vld [vmem:[%s178 + $0x178] sm:$0xff]
        %v253 = vld [vmem:[%s178 + $0x180] sm:$0xff]
        %v254 = vld [vmem:[%s178 + $0x188] sm:$0xff]
        %v255 = vld [vmem:[%s178 + $0x190] sm:$0xff]
        %v256 = vld [vmem:[%s178 + $0x198] sm:$0xff]
        %v257 = vld [vmem:[%s178 + $0x1a0] sm:$0xff]
        %v258 = vld [vmem:[%s178 + $0x1a8] sm:$0xff]
        %v259 = vld [vmem:[%s178 + $0x1b0] sm:$0xff]
        %v260 = vld [vmem:[%s178 + $0x1b8] sm:$0xff]
        %v261 = vld [vmem:[%s178 + $0x1c0] sm:$0xff]
        %v262 = vld [vmem:[%s178 + $0x1c8] sm:$0xff]
        %v263 = vld [vmem:[%s178 + $0x1d0] sm:$0xff]
        %v264 = vld [vmem:[%s178 + $0x1d8] sm:$0xff]
        %v265 = vld [vmem:[%s178 + $0x1e0] sm:$0xff]
        %v266 = vld [vmem:[%s178 + $0x1e8] sm:$0xff]
        %v267 = vld [vmem:[%s178 + $0x1f0] sm:$0xff]
        %v268 = vld [vmem:[%s178 + $0x1f8] sm:$0xff]
        %v269 = vld [vmem:[%s178 + $0x200] sm:$0xff]
        %v270 = vld [vmem:[%s178 + $0x208] sm:$0xff]
        %v271 = vld [vmem:[%s178 + $0x210] sm:$0xff]
        %v272 = vld [vmem:[%s178 + $0x218] sm:$0xff]
        %v273 = vld [vmem:[%s178 + $0x220] sm:$0xff]
        %v274 = vld [vmem:[%s178 + $0x228] sm:$0xff]
        %v275 = vld [vmem:[%s178 + $0x230] sm:$0xff]
        %v276 = vld [vmem:[%s178 + $0x238] sm:$0xff]
        %v277 = vld [vmem:[%s178 + $0x240] sm:$0xff]
        %v278 = vld [vmem:[%s178 + $0x248] sm:$0xff]
        %v279 = vld [vmem:[%s178 + $0x250] sm:$0xff]
        %v280 = vld [vmem:[%s178 + $0x258] sm:$0xff]
        %v281 = vld [vmem:[%s178 + $0x260] sm:$0xff]
        %v282 = vld [vmem:[%s178 + $0x268] sm:$0xff]
        %v283 = vld [vmem:[%s178 + $0x270] sm:$0xff]
        %v284 = vld [vmem:[%s178 + $0x278] sm:$0xff]
        %v285 = vld [vmem:[%s178 + $0x280] sm:$0xff]
        %v286 = vld [vmem:[%s178 + $0x288] sm:$0xff]
        %v287 = vld [vmem:[%s178 + $0x290] sm:$0xff]
        %v288 = vld [vmem:[%s178 + $0x298] sm:$0xff]
        %v289 = vld [vmem:[%s178 + $0x2a0] sm:$0xff]
        %v290 = vld [vmem:[%s178 + $0x2a8] sm:$0xff]
        %v291 = vld [vmem:[%s178 + $0x2b0] sm:$0xff]
        %v292 = vld [vmem:[%s178 + $0x2b8] sm:$0xff]
        %v293 = vld [vmem:[%s178 + $0x2c0] sm:$0xff]
        %v294 = vld [vmem:[%s178 + $0x2c8] sm:$0xff]
        %v295 = vld [vmem:[%s178 + $0x2d0] sm:$0xff]
        %v296 = vld [vmem:[%s178 + $0x2d8] sm:$0xff]
        %v297 = vld [vmem:[%s178 + $0x2e0] sm:$0xff]
        %v298 = vld [vmem:[%s178 + $0x2e8] sm:$0xff]
        %v299 = vld [vmem:[%s178 + $0x2f0] sm:$0xff]
        %v300 = vld [vmem:[%s178 + $0x2f8] sm:$0xff]
        %v301 = vld [vmem:[#allocation5] sm:$0xff]
        %v302 = vld [vmem:[#allocation5 + $0x8] sm:$0xff]
        %v303 = vld [vmem:[#allocation5 + $0x10] sm:$0xff]
        %v304 = vld [vmem:[#allocation5 + $0x18] sm:$0xff]
        %v305 = vld [vmem:[#allocation5 + $0x20] sm:$0xff]
        %v306 = vld [vmem:[#allocation5 + $0x28] sm:$0xff]
        %v307 = vld [vmem:[#allocation5 + $0x30] sm:$0xff]
        %v308 = vld [vmem:[#allocation5 + $0x38] sm:$0xff]
        %v309 = vld [vmem:[#allocation5 + $0x40] sm:$0xff]
        %v310 = vld [vmem:[#allocation5 + $0x48] sm:$0xff]
        %v311 = vld [vmem:[#allocation5 + $0x50] sm:$0xff]
        %v312 = vld [vmem:[#allocation5 + $0x58] sm:$0xff]
        %v313 = vld [vmem:[#allocation5 + $0x60] sm:$0xff]
        %v314 = vld [vmem:[#allocation5 + $0x68] sm:$0xff]
        %v315 = vld [vmem:[#allocation5 + $0x70] sm:$0xff]
        %v316 = vld [vmem:[#allocation5 + $0x78] sm:$0xff]
        %v317 = vld [vmem:[#allocation5 + $0x80] sm:$0xff]
        %v318 = vld [vmem:[#allocation5 + $0x88] sm:$0xff]
        %v319 = vld [vmem:[#allocation5 + $0x90] sm:$0xff]
        %v320 = vld [vmem:[#allocation5 + $0x98] sm:$0xff]
        %v321 = vld [vmem:[#allocation5 + $0xa0] sm:$0xff]
        %v322 = vld [vmem:[#allocation5 + $0xa8] sm:$0xff]
        %v323 = vld [vmem:[#allocation5 + $0xb0] sm:$0xff]
        %v324 = vld [vmem:[#allocation5 + $0xb8] sm:$0xff]
        %v325 = vld [vmem:[#allocation5 + $0xc0] sm:$0xff]
        %v326 = vld [vmem:[#allocation5 + $0xc8] sm:$0xff]
        %v327 = vld [vmem:[#allocation5 + $0xd0] sm:$0xff]
        %v328 = vld [vmem:[#allocation5 + $0xd8] sm:$0xff]
        %v329 = vld [vmem:[#allocation5 + $0xe0] sm:$0xff]
        %v330 = vld [vmem:[#allocation5 + $0xe8] sm:$0xff]
        %v331 = vld [vmem:[#allocation5 + $0xf0] sm:$0xff]
        %v332 = vld [vmem:[#allocation5 + $0xf8] sm:$0xff]
        %v333 = vld [vmem:[#allocation5 + $0x100] sm:$0xff]
        %v334 = vld [vmem:[#allocation5 + $0x108] sm:$0xff]
        %v335 = vld [vmem:[#allocation5 + $0x110] sm:$0xff]
        %v336 = vld [vmem:[#allocation5 + $0x118] sm:$0xff]
        %v337 = vld [vmem:[#allocation5 + $0x120] sm:$0xff]
        %v338 = vld [vmem:[#allocation5 + $0x128] sm:$0xff]
        %v339 = vld [vmem:[#allocation5 + $0x130] sm:$0xff]
        %v340 = vld [vmem:[#allocation5 + $0x138] sm:$0xff]
        %v341 = vld [vmem:[#allocation5 + $0x140] sm:$0xff]
        %v342 = vld [vmem:[#allocation5 + $0x148] sm:$0xff]
        %v343 = vld [vmem:[#allocation5 + $0x150] sm:$0xff]
        %v344 = vld [vmem:[#allocation5 + $0x158] sm:$0xff]
        %v345 = vld [vmem:[#allocation5 + $0x160] sm:$0xff]
        %v346 = vld [vmem:[#allocation5 + $0x168] sm:$0xff]
        %v347 = vld [vmem:[#allocation5 + $0x170] sm:$0xff]
        %v348 = vld [vmem:[#allocation5 + $0x178] sm:$0xff]
        %v349 = vld [vmem:[#allocation5 + $0x180] sm:$0xff]
        %v350 = vld [vmem:[#allocation5 + $0x188] sm:$0xff]
        %v351 = vld [vmem:[#allocation5 + $0x190] sm:$0xff]
        %v352 = vld [vmem:[#allocation5 + $0x198] sm:$0xff]
        %v353 = vld [vmem:[#allocation5 + $0x1a0] sm:$0xff]
        %v354 = vld [vmem:[#allocation5 + $0x1a8] sm:$0xff]
        %v355 = vld [vmem:[#allocation5 + $0x1b0] sm:$0xff]
        %v356 = vld [vmem:[#allocation5 + $0x1b8] sm:$0xff]
        %v357 = vld [vmem:[#allocation5 + $0x1c0] sm:$0xff]
        %v358 = vld [vmem:[#allocation5 + $0x1c8] sm:$0xff]
        %v359 = vld [vmem:[#allocation5 + $0x1d0] sm:$0xff]
        %v360 = vld [vmem:[#allocation5 + $0x1d8] sm:$0xff]
        %v361 = vld [vmem:[#allocation5 + $0x1e0] sm:$0xff]
        %v362 = vld [vmem:[#allocation5 + $0x1e8] sm:$0xff]
        %v363 = vld [vmem:[#allocation5 + $0x1f0] sm:$0xff]
        %v364 = vld [vmem:[#allocation5 + $0x1f8] sm:$0xff]
        %v365 = vld [vmem:[#allocation5 + $0x200] sm:$0xff]
        %v366 = vld [vmem:[#allocation5 + $0x208] sm:$0xff]
        %v367 = vld [vmem:[#allocation5 + $0x210] sm:$0xff]
        %v368 = vld [vmem:[#allocation5 + $0x218] sm:$0xff]
        %v369 = vld [vmem:[#allocation5 + $0x220] sm:$0xff]
        %v370 = vld [vmem:[#allocation5 + $0x228] sm:$0xff]
        %v371 = vld [vmem:[#allocation5 + $0x230] sm:$0xff]
        %v372 = vld [vmem:[#allocation5 + $0x238] sm:$0xff]
        %v373 = vld [vmem:[#allocation5 + $0x240] sm:$0xff]
        %v374 = vld [vmem:[#allocation5 + $0x248] sm:$0xff]
        %v375 = vld [vmem:[#allocation5 + $0x250] sm:$0xff]
        %v376 = vld [vmem:[#allocation5 + $0x258] sm:$0xff]
        %v377 = vld [vmem:[#allocation5 + $0x260] sm:$0xff]
        %v378 = vld [vmem:[#allocation5 + $0x268] sm:$0xff]
        %v379 = vld [vmem:[#allocation5 + $0x270] sm:$0xff]
        %v380 = vld [vmem:[#allocation5 + $0x278] sm:$0xff]
        %v381 = vld [vmem:[#allocation5 + $0x280] sm:$0xff]
        %v382 = vld [vmem:[#allocation5 + $0x288] sm:$0xff]
        %v383 = vld [vmem:[#allocation5 + $0x290] sm:$0xff]
        %v384 = vld [vmem:[#allocation5 + $0x298] sm:$0xff]
        %v385 = vld [vmem:[#allocation5 + $0x2a0] sm:$0xff]
        %v386 = vld [vmem:[#allocation5 + $0x2a8] sm:$0xff]
        %v387 = vld [vmem:[#allocation5 + $0x2b0] sm:$0xff]
        %v388 = vld [vmem:[#allocation5 + $0x2b8] sm:$0xff]
        %v389 = vld [vmem:[#allocation5 + $0x2c0] sm:$0xff]
        %v390 = vld [vmem:[#allocation5 + $0x2c8] sm:$0xff]
        %v391 = vld [vmem:[#allocation5 + $0x2d0] sm:$0xff]
        %v392 = vld [vmem:[#allocation5 + $0x2d8] sm:$0xff]
        %v393 = vld [vmem:[#allocation5 + $0x2e0] sm:$0xff]
        %v394 = vld [vmem:[#allocation5 + $0x2e8] sm:$0xff]
        %v395 = vld [vmem:[#allocation5 + $0x2f0] sm:$0xff]
        %v396 = vld [vmem:[#allocation5 + $0x2f8] sm:$0xff]
        %397 = vmatprep.subr.mxu0 %v392
        %398 = vmatpush1.xpose.msra.mxu0 %v391
        %399 = vmatprep.subr.mxu0 %v386
        %400 = vmatpush1.xpose.msra.mxu0 %v385
        %401 = vmatprep.subr.mxu0 %v380
        %402 = vmatpush1.xpose.msra.mxu0 %v379
        %403 = vmatprep.subr.mxu0 %v374
        %404 = vmatpush1.xpose.msra.mxu0 %v373
        %405 = vmatprep.subr.mxu0 %v368
        %406 = vmatpush1.xpose.msra.mxu0 %v367
        %407 = vmatprep.subr.mxu0 %v362
        %408 = vmatpush1.xpose.msra.mxu0 %v361
        %409 = vmatprep.subr.mxu0 %v356
        %410 = vmatpush1.xpose.msra.mxu0 %v355
        %411 = vmatprep.subr.mxu0 %v350
        %412 = vmatpush1.xpose.msra.mxu0 %v349
        %413 = vmatprep.subr.mxu0 %v344
        %414 = vmatpush1.xpose.msra.mxu0 %v343
        %415 = vmatprep.subr.mxu0 %v338
        %416 = vmatpush1.xpose.msra.mxu0 %v337
        %417 = vmatprep.subr.mxu0 %v332
        %418 = vmatpush1.xpose.msra.mxu0 %v331
        %419 = vmatprep.subr.mxu0 %v326
        %420 = vmatpush1.xpose.msra.mxu0 %v325
        %421 = vmatprep.subr.mxu0 %v320
        %422 = vmatpush1.xpose.msra.mxu0 %v319
        %423 = vmatprep.subr.mxu0 %v314
        %424 = vmatpush1.xpose.msra.mxu0 %v313
        %425 = vmatprep.subr.mxu0 %v308
        %426 = vmatpush1.xpose.msra.mxu0 %v307
        %427 = vmatprep.subr.mxu0 %v302
        %428 = vmatpush1.xpose.msra.mxu0 %v301
        %429 = vmatprep.subr.mxu0 0.0
        %430 = vmatpush2.xpose.msra.mxu0 0.0
        %431 = vmatprep.subr.mxu0 0.0
        %432 = vmatpush2.xpose.msra.mxu0 0.0
        %433 = vmatprep.subr.mxu0 0.0
        %434 = vmatpush2.xpose.msra.mxu0 0.0
        %435 = vmatprep.subr.mxu0 0.0
        %436 = vmatpush2.xpose.msra.mxu0 0.0
        %437 = vmatprep.subr.mxu0 0.0
        %438 = vmatpush2.xpose.msra.mxu0 0.0
        %439 = vmatprep.subr.mxu0 0.0
        %440 = vmatpush2.xpose.msra.mxu0 0.0
        %441 = vmatprep.subr.mxu0 0.0
        %442 = vmatpush2.xpose.msra.mxu0 0.0
        %443 = vmatprep.subr.mxu0 0.0
        %444 = vmatpush2.xpose.msra.mxu0 0.0
        %445 = vmatprep.subr.mxu0 0.0
        %446 = vmatpush2.xpose.msra.mxu0 0.0
        %447 = vmatprep.subr.mxu0 0.0
        %448 = vmatpush2.xpose.msra.mxu0 0.0
        %449 = vmatprep.subr.mxu0 0.0
        %450 = vmatpush2.xpose.msra.mxu0 0.0
        %451 = vmatprep.subr.mxu0 0.0
        %452 = vmatpush2.xpose.msra.mxu0 0.0
        %453 = vmatprep.subr.mxu0 0.0
        %454 = vmatpush2.xpose.msra.mxu0 0.0
        %455 = vmatprep.subr.mxu0 0.0
        %456 = vmatpush2.xpose.msra.mxu0 0.0
        %457 = vmatprep.subr.mxu0 0.0
        %458 = vmatpush2.xpose.msra.mxu0 0.0
        %459 = vmatprep.subr.mxu0 0.0
        %460 = vmatpush2.xpose.msra.mxu0 0.0
        %461 = vmatprep.mubr.f32.mxu0 %v206
        %462 = vmatmul.mubr.f32.gmra.mxu0 %v205
        %v463 = vpop.f32.mrf.mxu0
        %v464 = vadd.f32 0.0, %v463
        %v465 = vpop.f32.mrf.mxu0
        %466 = vmatprep.mubr.f32.mxu0 %v212
        %467 = vmatmul.mubr.f32.gmra.mxu0 %v211
        %v468 = vpop.f32.mrf.mxu0
        %v469 = vadd.f32 0.0, %v468
        %v470 = vpop.f32.mrf.mxu0
        %471 = vmatprep.mubr.f32.mxu0 %v218
        %472 = vmatmul.mubr.f32.gmra.mxu0 %v217
        %v473 = vpop.f32.mrf.mxu0
        %v474 = vadd.f32 0.0, %v473
        %v475 = vpop.f32.mrf.mxu0
        %476 = vmatprep.mubr.f32.mxu0 %v224
        %477 = vmatmul.mubr.f32.gmra.mxu0 %v223
        %v478 = vpop.f32.mrf.mxu0
        %v479 = vadd.f32 0.0, %v478
        %v480 = vpop.f32.mrf.mxu0
        %481 = vmatprep.mubr.f32.mxu0 %v230
        %482 = vmatmul.mubr.f32.gmra.mxu0 %v229
        %v483 = vpop.f32.mrf.mxu0
        %v484 = vadd.f32 0.0, %v483
        %v485 = vpop.f32.mrf.mxu0
        %486 = vmatprep.mubr.f32.mxu0 %v236
        %487 = vmatmul.mubr.f32.gmra.mxu0 %v235
        %v488 = vpop.f32.mrf.mxu0
        %v489 = vadd.f32 0.0, %v488
        %v490 = vpop.f32.mrf.mxu0
        %491 = vmatprep.mubr.f32.mxu0 %v242
        %492 = vmatmul.mubr.f32.gmra.mxu0 %v241
        %v493 = vpop.f32.mrf.mxu0
        %v494 = vadd.f32 0.0, %v493
        %v495 = vpop.f32.mrf.mxu0
        %496 = vmatprep.mubr.f32.mxu0 %v248
        %497 = vmatmul.mubr.f32.gmra.mxu0 %v247
        %v498 = vpop.f32.mrf.mxu0
        %v499 = vadd.f32 0.0, %v498
        %v500 = vpop.f32.mrf.mxu0
        %501 = vmatprep.mubr.f32.mxu0 %v254
        %502 = vmatmul.mubr.f32.gmra.mxu0 %v253
        %v503 = vpop.f32.mrf.mxu0
        %v504 = vadd.f32 0.0, %v503
        %v505 = vpop.f32.mrf.mxu0
        %506 = vmatprep.mubr.f32.mxu0 %v260
        %507 = vmatmul.mubr.f32.gmra.mxu0 %v259
        %v508 = vpop.f32.mrf.mxu0
        %v509 = vadd.f32 0.0, %v508
        %v510 = vpop.f32.mrf.mxu0
        %511 = vmatprep.mubr.f32.mxu0 %v266
        %512 = vmatmul.mubr.f32.gmra.mxu0 %v265
        %v513 = vpop.f32.mrf.mxu0
        %v514 = vadd.f32 0.0, %v513
        %v515 = vpop.f32.mrf.mxu0
        %516 = vmatprep.mubr.f32.mxu0 %v272
        %517 = vmatmul.mubr.f32.gmra.mxu0 %v271
        %v518 = vpop.f32.mrf.mxu0
        %v519 = vadd.f32 0.0, %v518
        %v520 = vpop.f32.mrf.mxu0
        %521 = vmatprep.mubr.f32.mxu0 %v278
        %522 = vmatmul.mubr.f32.gmra.mxu0 %v277
        %v523 = vpop.f32.mrf.mxu0
        %v524 = vadd.f32 0.0, %v523
        %v525 = vpop.f32.mrf.mxu0
        %526 = vmatprep.mubr.f32.mxu0 %v284
        %527 = vmatmul.mubr.f32.gmra.mxu0 %v283
        %v528 = vpop.f32.mrf.mxu0
        %v529 = vadd.f32 0.0, %v528
        %v530 = vpop.f32.mrf.mxu0
        %531 = vmatprep.mubr.f32.mxu0 %v290
        %532 = vmatmul.mubr.f32.gmra.mxu0 %v289
        %v533 = vpop.f32.mrf.mxu0
        %v534 = vadd.f32 0.0, %v533
        %v535 = vpop.f32.mrf.mxu0
        %536 = vmatprep.mubr.f32.mxu0 %v296
        %537 = vmatmul.mubr.f32.gmra.mxu0 %v295
        %v538 = vpop.f32.mrf.mxu0
        %v539 = vadd.f32 0.0, %v538
        %v540 = vpop.f32.mrf.mxu0
        %541 = vdwg.mxu0
        %542 = vmatprep.subr.mxu0 %v394
        %543 = vmatpush1.xpose.msra.mxu0 %v393
        %544 = vmatprep.subr.mxu0 %v388
        %545 = vmatpush1.xpose.msra.mxu0 %v387
        %546 = vmatprep.subr.mxu0 %v382
        %547 = vmatpush1.xpose.msra.mxu0 %v381
        %548 = vmatprep.subr.mxu0 %v376
        %549 = vmatpush1.xpose.msra.mxu0 %v375
        %550 = vmatprep.subr.mxu0 %v370
        %551 = vmatpush1.xpose.msra.mxu0 %v369
        %552 = vmatprep.subr.mxu0 %v364
        %553 = vmatpush1.xpose.msra.mxu0 %v363
        %554 = vmatprep.subr.mxu0 %v358
        %555 = vmatpush1.xpose.msra.mxu0 %v357
        %556 = vmatprep.subr.mxu0 %v352
        %557 = vmatpush1.xpose.msra.mxu0 %v351
        %558 = vmatprep.subr.mxu0 %v346
        %559 = vmatpush1.xpose.msra.mxu0 %v345
        %560 = vmatprep.subr.mxu0 %v340
        %561 = vmatpush1.xpose.msra.mxu0 %v339
        %562 = vmatprep.subr.mxu0 %v334
        %563 = vmatpush1.xpose.msra.mxu0 %v333
        %564 = vmatprep.subr.mxu0 %v328
        %565 = vmatpush1.xpose.msra.mxu0 %v327
        %566 = vmatprep.subr.mxu0 %v322
        %567 = vmatpush1.xpose.msra.mxu0 %v321
        %568 = vmatprep.subr.mxu0 %v316
        %569 = vmatpush1.xpose.msra.mxu0 %v315
        %570 = vmatprep.subr.mxu0 %v310
        %571 = vmatpush1.xpose.msra.mxu0 %v309
        %572 = vmatprep.subr.mxu0 %v304
        %573 = vmatpush1.xpose.msra.mxu0 %v303
        %574 = vmatprep.subr.mxu0 0.0
        %575 = vmatpush2.xpose.msra.mxu0 0.0
        %576 = vmatprep.subr.mxu0 0.0
        %577 = vmatpush2.xpose.msra.mxu0 0.0
        %578 = vmatprep.subr.mxu0 0.0
        %579 = vmatpush2.xpose.msra.mxu0 0.0
        %580 = vmatprep.subr.mxu0 0.0
        %581 = vmatpush2.xpose.msra.mxu0 0.0
        %582 = vmatprep.subr.mxu0 0.0
        %583 = vmatpush2.xpose.msra.mxu0 0.0
        %584 = vmatprep.subr.mxu0 0.0
        %585 = vmatpush2.xpose.msra.mxu0 0.0
        %586 = vmatprep.subr.mxu0 0.0
        %587 = vmatpush2.xpose.msra.mxu0 0.0
        %588 = vmatprep.subr.mxu0 0.0
        %589 = vmatpush2.xpose.msra.mxu0 0.0
        %590 = vmatprep.subr.mxu0 0.0
        %591 = vmatpush2.xpose.msra.mxu0 0.0
        %592 = vmatprep.subr.mxu0 0.0
        %593 = vmatpush2.xpose.msra.mxu0 0.0
        %594 = vmatprep.subr.mxu0 0.0
        %595 = vmatpush2.xpose.msra.mxu0 0.0
        %596 = vmatprep.subr.mxu0 0.0
        %597 = vmatpush2.xpose.msra.mxu0 0.0
        %598 = vmatprep.subr.mxu0 0.0
        %599 = vmatpush2.xpose.msra.mxu0 0.0
        %600 = vmatprep.subr.mxu0 0.0
        %601 = vmatpush2.xpose.msra.mxu0 0.0
        %602 = vmatprep.subr.mxu0 0.0
        %603 = vmatpush2.xpose.msra.mxu0 0.0
        %604 = vmatprep.subr.mxu0 0.0
        %605 = vmatpush2.xpose.msra.mxu0 0.0
        %606 = vmatprep.mubr.f32.mxu0 %v208
        %607 = vmatmul.mubr.f32.gmra.mxu0 %v207
        %v608 = vpop.f32.mrf.mxu0
        %v609 = vadd.f32 %v464, %v608
        %v610 = vpop.f32.mrf.mxu0
        %611 = vmatprep.mubr.f32.mxu0 %v214
        %612 = vmatmul.mubr.f32.gmra.mxu0 %v213
        %v613 = vpop.f32.mrf.mxu0
        %v614 = vadd.f32 %v469, %v613
        %v615 = vpop.f32.mrf.mxu0
        %616 = vmatprep.mubr.f32.mxu0 %v220
        %617 = vmatmul.mubr.f32.gmra.mxu0 %v219
        %v618 = vpop.f32.mrf.mxu0
        %v619 = vadd.f32 %v474, %v618
        %v620 = vpop.f32.mrf.mxu0
        %621 = vmatprep.mubr.f32.mxu0 %v226
        %622 = vmatmul.mubr.f32.gmra.mxu0 %v225
        %v623 = vpop.f32.mrf.mxu0
        %v624 = vadd.f32 %v479, %v623
        %v625 = vpop.f32.mrf.mxu0
        %626 = vmatprep.mubr.f32.mxu0 %v232
        %627 = vmatmul.mubr.f32.gmra.mxu0 %v231
        %v628 = vpop.f32.mrf.mxu0
        %v629 = vadd.f32 %v484, %v628
        %v630 = vpop.f32.mrf.mxu0
        %631 = vmatprep.mubr.f32.mxu0 %v238
        %632 = vmatmul.mubr.f32.gmra.mxu0 %v237
        %v633 = vpop.f32.mrf.mxu0
        %v634 = vadd.f32 %v489, %v633
        %v635 = vpop.f32.mrf.mxu0
        %636 = vmatprep.mubr.f32.mxu0 %v244
        %637 = vmatmul.mubr.f32.gmra.mxu0 %v243
        %v638 = vpop.f32.mrf.mxu0
        %v639 = vadd.f32 %v494, %v638
        %v640 = vpop.f32.mrf.mxu0
        %641 = vmatprep.mubr.f32.mxu0 %v250
        %642 = vmatmul.mubr.f32.gmra.mxu0 %v249
        %v643 = vpop.f32.mrf.mxu0
        %v644 = vadd.f32 %v499, %v643
        %v645 = vpop.f32.mrf.mxu0
        %646 = vmatprep.mubr.f32.mxu0 %v256
        %647 = vmatmul.mubr.f32.gmra.mxu0 %v255
        %v648 = vpop.f32.mrf.mxu0
        %v649 = vadd.f32 %v504, %v648
        %v650 = vpop.f32.mrf.mxu0
        %651 = vmatprep.mubr.f32.mxu0 %v262
        %652 = vmatmul.mubr.f32.gmra.mxu0 %v261
        %v653 = vpop.f32.mrf.mxu0
        %v654 = vadd.f32 %v509, %v653
        %v655 = vpop.f32.mrf.mxu0
        %656 = vmatprep.mubr.f32.mxu0 %v268
        %657 = vmatmul.mubr.f32.gmra.mxu0 %v267
        %v658 = vpop.f32.mrf.mxu0
        %v659 = vadd.f32 %v514, %v658
        %v660 = vpop.f32.mrf.mxu0
        %661 = vmatprep.mubr.f32.mxu0 %v274
        %662 = vmatmul.mubr.f32.gmra.mxu0 %v273
        %v663 = vpop.f32.mrf.mxu0
        %v664 = vadd.f32 %v519, %v663
        %v665 = vpop.f32.mrf.mxu0
        %666 = vmatprep.mubr.f32.mxu0 %v280
        %667 = vmatmul.mubr.f32.gmra.mxu0 %v279
        %v668 = vpop.f32.mrf.mxu0
        %v669 = vadd.f32 %v524, %v668
        %v670 = vpop.f32.mrf.mxu0
        %671 = vmatprep.mubr.f32.mxu0 %v286
        %672 = vmatmul.mubr.f32.gmra.mxu0 %v285
        %v673 = vpop.f32.mrf.mxu0
        %v674 = vadd.f32 %v529, %v673
        %v675 = vpop.f32.mrf.mxu0
        %676 = vmatprep.mubr.f32.mxu0 %v292
        %677 = vmatmul.mubr.f32.gmra.mxu0 %v291
        %v678 = vpop.f32.mrf.mxu0
        %v679 = vadd.f32 %v534, %v678
        %v680 = vpop.f32.mrf.mxu0
        %681 = vmatprep.mubr.f32.mxu0 %v298
        %682 = vmatmul.mubr.f32.gmra.mxu0 %v297
        %v683 = vpop.f32.mrf.mxu0
        %v684 = vadd.f32 %v539, %v683
        %v685 = vpop.f32.mrf.mxu0
        %686 = vdwg.mxu0
        %687 = vmatprep.subr.mxu0 %v396
        %688 = vmatpush1.xpose.msra.mxu0 %v395
        %689 = vmatprep.subr.mxu0 %v390
        %690 = vmatpush1.xpose.msra.mxu0 %v389
        %691 = vmatprep.subr.mxu0 %v384
        %692 = vmatpush1.xpose.msra.mxu0 %v383
        %693 = vmatprep.subr.mxu0 %v378
        %694 = vmatpush1.xpose.msra.mxu0 %v377
        %695 = vmatprep.subr.mxu0 %v372
        %696 = vmatpush1.xpose.msra.mxu0 %v371
        %697 = vmatprep.subr.mxu0 %v366
        %698 = vmatpush1.xpose.msra.mxu0 %v365
        %699 = vmatprep.subr.mxu0 %v360
        %700 = vmatpush1.xpose.msra.mxu0 %v359
        %701 = vmatprep.subr.mxu0 %v354
        %702 = vmatpush1.xpose.msra.mxu0 %v353
        %703 = vmatprep.subr.mxu0 %v348
        %704 = vmatpush1.xpose.msra.mxu0 %v347
        %705 = vmatprep.subr.mxu0 %v342
        %706 = vmatpush1.xpose.msra.mxu0 %v341
        %707 = vmatprep.subr.mxu0 %v336
        %708 = vmatpush1.xpose.msra.mxu0 %v335
        %709 = vmatprep.subr.mxu0 %v330
        %710 = vmatpush1.xpose.msra.mxu0 %v329
        %711 = vmatprep.subr.mxu0 %v324
        %712 = vmatpush1.xpose.msra.mxu0 %v323
        %713 = vmatprep.subr.mxu0 %v318
        %714 = vmatpush1.xpose.msra.mxu0 %v317
        %715 = vmatprep.subr.mxu0 %v312
        %716 = vmatpush1.xpose.msra.mxu0 %v311
        %717 = vmatprep.subr.mxu0 %v306
        %718 = vmatpush1.xpose.msra.mxu0 %v305
        %719 = vmatprep.subr.mxu0 0.0
        %720 = vmatpush2.xpose.msra.mxu0 0.0
        %721 = vmatprep.subr.mxu0 0.0
        %722 = vmatpush2.xpose.msra.mxu0 0.0
        %723 = vmatprep.subr.mxu0 0.0
        %724 = vmatpush2.xpose.msra.mxu0 0.0
        %725 = vmatprep.subr.mxu0 0.0
        %726 = vmatpush2.xpose.msra.mxu0 0.0
        %727 = vmatprep.subr.mxu0 0.0
        %728 = vmatpush2.xpose.msra.mxu0 0.0
        %729 = vmatprep.subr.mxu0 0.0
        %730 = vmatpush2.xpose.msra.mxu0 0.0
        %731 = vmatprep.subr.mxu0 0.0
        %732 = vmatpush2.xpose.msra.mxu0 0.0
        %733 = vmatprep.subr.mxu0 0.0
        %734 = vmatpush2.xpose.msra.mxu0 0.0
        %735 = vmatprep.subr.mxu0 0.0
        %736 = vmatpush2.xpose.msra.mxu0 0.0
        %737 = vmatprep.subr.mxu0 0.0
        %738 = vmatpush2.xpose.msra.mxu0 0.0
        %739 = vmatprep.subr.mxu0 0.0
        %740 = vmatpush2.xpose.msra.mxu0 0.0
        %741 = vmatprep.subr.mxu0 0.0
        %742 = vmatpush2.xpose.msra.mxu0 0.0
        %743 = vmatprep.subr.mxu0 0.0
        %744 = vmatpush2.xpose.msra.mxu0 0.0
        %745 = vmatprep.subr.mxu0 0.0
        %746 = vmatpush2.xpose.msra.mxu0 0.0
        %747 = vmatprep.subr.mxu0 0.0
        %748 = vmatpush2.xpose.msra.mxu0 0.0
        %749 = vmatprep.subr.mxu0 0.0
        %750 = vmatpush2.xpose.msra.mxu0 0.0
        %751 = vmatprep.mubr.f32.mxu0 %v210
        %752 = vmatmul.mubr.f32.gmra.mxu0 %v209
        %v753 = vpop.f32.mrf.mxu0
        %v754 = vadd.f32 %v609, %v753
        %v755 = vpop.f32.mrf.mxu0
        %756 = vmatprep.mubr.f32.mxu0 %v216
        %757 = vmatmul.mubr.f32.gmra.mxu0 %v215
        %v758 = vpop.f32.mrf.mxu0
        %v759 = vadd.f32 %v614, %v758
        %v760 = vpop.f32.mrf.mxu0
        %761 = vmatprep.mubr.f32.mxu0 %v222
        %762 = vmatmul.mubr.f32.gmra.mxu0 %v221
        %v763 = vpop.f32.mrf.mxu0
        %v764 = vadd.f32 %v619, %v763
        %v765 = vpop.f32.mrf.mxu0
        %766 = vmatprep.mubr.f32.mxu0 %v228
        %767 = vmatmul.mubr.f32.gmra.mxu0 %v227
        %v768 = vpop.f32.mrf.mxu0
        %v769 = vadd.f32 %v624, %v768
        %v770 = vpop.f32.mrf.mxu0
        %771 = vmatprep.mubr.f32.mxu0 %v234
        %772 = vmatmul.mubr.f32.gmra.mxu0 %v233
        %v773 = vpop.f32.mrf.mxu0
        %v774 = vadd.f32 %v629, %v773
        %v775 = vpop.f32.mrf.mxu0
        %776 = vmatprep.mubr.f32.mxu0 %v240
        %777 = vmatmul.mubr.f32.gmra.mxu0 %v239
        %v778 = vpop.f32.mrf.mxu0
        %v779 = vadd.f32 %v634, %v778
        %v780 = vpop.f32.mrf.mxu0
        %781 = vmatprep.mubr.f32.mxu0 %v246
        %782 = vmatmul.mubr.f32.gmra.mxu0 %v245
        %v783 = vpop.f32.mrf.mxu0
        %v784 = vadd.f32 %v639, %v783
        %v785 = vpop.f32.mrf.mxu0
        %786 = vmatprep.mubr.f32.mxu0 %v252
        %787 = vmatmul.mubr.f32.gmra.mxu0 %v251
        %v788 = vpop.f32.mrf.mxu0
        %v789 = vadd.f32 %v644, %v788
        %v790 = vpop.f32.mrf.mxu0
        %791 = vmatprep.mubr.f32.mxu0 %v258
        %792 = vmatmul.mubr.f32.gmra.mxu0 %v257
        %v793 = vpop.f32.mrf.mxu0
        %v794 = vadd.f32 %v649, %v793
        %v795 = vpop.f32.mrf.mxu0
        %796 = vmatprep.mubr.f32.mxu0 %v264
        %797 = vmatmul.mubr.f32.gmra.mxu0 %v263
        %v798 = vpop.f32.mrf.mxu0
        %v799 = vadd.f32 %v654, %v798
        %v800 = vpop.f32.mrf.mxu0
        %801 = vmatprep.mubr.f32.mxu0 %v270
        %802 = vmatmul.mubr.f32.gmra.mxu0 %v269
        %v803 = vpop.f32.mrf.mxu0
        %v804 = vadd.f32 %v659, %v803
        %v805 = vpop.f32.mrf.mxu0
        %806 = vmatprep.mubr.f32.mxu0 %v276
        %807 = vmatmul.mubr.f32.gmra.mxu0 %v275
        %v808 = vpop.f32.mrf.mxu0
        %v809 = vadd.f32 %v664, %v808
        %v810 = vpop.f32.mrf.mxu0
        %811 = vmatprep.mubr.f32.mxu0 %v282
        %812 = vmatmul.mubr.f32.gmra.mxu0 %v281
        %v813 = vpop.f32.mrf.mxu0
        %v814 = vadd.f32 %v669, %v813
        %v815 = vpop.f32.mrf.mxu0
        %816 = vmatprep.mubr.f32.mxu0 %v288
        %817 = vmatmul.mubr.f32.gmra.mxu0 %v287
        %v818 = vpop.f32.mrf.mxu0
        %v819 = vadd.f32 %v674, %v818
        %v820 = vpop.f32.mrf.mxu0
        %821 = vmatprep.mubr.f32.mxu0 %v294
        %822 = vmatmul.mubr.f32.gmra.mxu0 %v293
        %v823 = vpop.f32.mrf.mxu0
        %v824 = vadd.f32 %v679, %v823
        %v825 = vpop.f32.mrf.mxu0
        %826 = vmatprep.mubr.f32.mxu0 %v300
        %827 = vmatmul.mubr.f32.gmra.mxu0 %v299
        %v828 = vpop.f32.mrf.mxu0
        %v829 = vadd.f32 %v684, %v828
        %v830 = vpop.f32.mrf.mxu0
        %831 = vdwg.mxu0
        %v832 = vmax.f32 %v754, 0.0
        %v833 = vmax.f32 %v759, 0.0
        %v834 = vmax.f32 %v764, 0.0
        %v835 = vmax.f32 %v769, 0.0
        %v836 = vmax.f32 %v774, 0.0
        %v837 = vmax.f32 %v779, 0.0
        %v838 = vmax.f32 %v784, 0.0
        %v839 = vmax.f32 %v789, 0.0
        %v840 = vmax.f32 %v794, 0.0
        %v841 = vmax.f32 %v799, 0.0
        %v842 = vmax.f32 %v804, 0.0
        %v843 = vmax.f32 %v809, 0.0
        %v844 = vmax.f32 %v814, 0.0
        %v845 = vmax.f32 %v819, 0.0
        %v846 = vmax.f32 %v824, 0.0
        %v847 = vmax.f32 %v829, 0.0
        %v848 = vld [vmem:[%s2] sm:$0x1]
        %849 = vmatprep.subr.mxu0 0.0
        %850 = vmatpush1.xpose.msra.mxu0 %v847
        %851 = vmatprep.subr.mxu0 0.0
        %852 = vmatpush1.xpose.msra.mxu0 %v846
        %853 = vmatprep.subr.mxu0 0.0
        %854 = vmatpush1.xpose.msra.mxu0 %v845
        %855 = vmatprep.subr.mxu0 0.0
        %856 = vmatpush1.xpose.msra.mxu0 %v844
        %857 = vmatprep.subr.mxu0 0.0
        %858 = vmatpush1.xpose.msra.mxu0 %v843
        %859 = vmatprep.subr.mxu0 0.0
        %860 = vmatpush1.xpose.msra.mxu0 %v842
        %861 = vmatprep.subr.mxu0 0.0
        %862 = vmatpush1.xpose.msra.mxu0 %v841
        %863 = vmatprep.subr.mxu0 0.0
        %864 = vmatpush1.xpose.msra.mxu0 %v840
        %865 = vmatprep.subr.mxu0 0.0
        %866 = vmatpush1.xpose.msra.mxu0 %v839
        %867 = vmatprep.subr.mxu0 0.0
        %868 = vmatpush1.xpose.msra.mxu0 %v838
        %869 = vmatprep.subr.mxu0 0.0
        %870 = vmatpush1.xpose.msra.mxu0 %v837
        %871 = vmatprep.subr.mxu0 0.0
        %872 = vmatpush1.xpose.msra.mxu0 %v836
        %873 = vmatprep.subr.mxu0 0.0
        %874 = vmatpush1.xpose.msra.mxu0 %v835
        %875 = vmatprep.subr.mxu0 0.0
        %876 = vmatpush1.xpose.msra.mxu0 %v834
        %877 = vmatprep.subr.mxu0 0.0
        %878 = vmatpush1.xpose.msra.mxu0 %v833
        %879 = vmatprep.subr.mxu0 0.0
        %880 = vmatpush1.xpose.msra.mxu0 %v832
        %881 = vmatprep.subr.mxu0 0.0
        %882 = vmatpush2.xpose.msra.mxu0 0.0
        %883 = vmatprep.subr.mxu0 0.0
        %884 = vmatpush2.xpose.msra.mxu0 0.0
        %885 = vmatprep.subr.mxu0 0.0
        %886 = vmatpush2.xpose.msra.mxu0 0.0
        %887 = vmatprep.subr.mxu0 0.0
        %888 = vmatpush2.xpose.msra.mxu0 0.0
        %889 = vmatprep.subr.mxu0 0.0
        %890 = vmatpush2.xpose.msra.mxu0 0.0
        %891 = vmatprep.subr.mxu0 0.0
        %892 = vmatpush2.xpose.msra.mxu0 0.0
        %893 = vmatprep.subr.mxu0 0.0
        %894 = vmatpush2.xpose.msra.mxu0 0.0
        %895 = vmatprep.subr.mxu0 0.0
        %896 = vmatpush2.xpose.msra.mxu0 0.0
        %897 = vmatprep.subr.mxu0 0.0
        %898 = vmatpush2.xpose.msra.mxu0 0.0
        %899 = vmatprep.subr.mxu0 0.0
        %900 = vmatpush2.xpose.msra.mxu0 0.0
        %901 = vmatprep.subr.mxu0 0.0
        %902 = vmatpush2.xpose.msra.mxu0 0.0
        %903 = vmatprep.subr.mxu0 0.0
        %904 = vmatpush2.xpose.msra.mxu0 0.0
        %905 = vmatprep.subr.mxu0 0.0
        %906 = vmatpush2.xpose.msra.mxu0 0.0
        %907 = vmatprep.subr.mxu0 0.0
        %908 = vmatpush2.xpose.msra.mxu0 0.0
        %909 = vmatprep.subr.mxu0 0.0
        %910 = vmatpush2.xpose.msra.mxu0 0.0
        %911 = vmatprep.subr.mxu0 0.0
        %912 = vmatpush2.xpose.msra.mxu0 0.0
        %913 = vmatprep.mubr.f32.mxu0 0.0
        %914 = vmatmul.mubr.f32.gmra.mxu0 %v848
        %v915 = vpop.f32.mrf.mxu0
        %v916 = vadd.f32 0.0, %v915
        %v917 = vpop.f32.mrf.mxu0
        %918 = vdwg.mxu0
        %919 = vst [vmem:[%s203] sm:$0x1] %v916
        %s920 = sand.u32 %s97, 1
        %s921 = scalar_lea.sflag [#allocation4], %s920
        %s922 = sand.u32 %s97, 1
        %s923 = scalar_lea.vmem [#allocation7], %s922
        // Predicated region
        $region41: #{nnue_forward.1} parent=31 // pred_check
          %p924 = pneg %p107
        $region42: #{nnue_forward.1} parent=31 // pred_check_branch
          %926 = sbr.rel (%p924) target = $region44
        $region43: #{nnue_forward.1} parent=31 // pred_region
          %s928 = ssub.s32 16, 16
          %929 = vsyncadd %s921, %s928
          %s930 = smul.addr %s21, 16
          %s931 = scalar_lea.hbm %s3, %s930
          %s933 = sshll.u32 %s923, 4
          %s934 = int_to_ptr.vmem [resolvable:$true] %s933
          %936 = dma.vmem_to_hbm [thread:$0]  %s934, 16, %s931, %s921
        $region44: #{nnue_forward.1} parent=31 // pred_fallthru
          _
      $region32: #{nnue_forward.1} parent=5 // pred_fallthru
        _
      %p937 = scmp.le.s32.totalorder 2, %s16
      // Predicated region
      $region45: #{nnue_forward.1} parent=5 // pred_check
        %p938 = pneg %p937
      $region46: #{nnue_forward.1} parent=5 // pred_check_branch
        %940 = sbr.rel (%p938) target = $region48
      $region47: #{nnue_forward.1} parent=5 // pred_region
        %s941 = ssub.s32 %s16, 2
        // Predicated region
        $region49: #{nnue_forward.1} parent=47 // pred_check
          %p942 = pneg %p113
        $region50: #{nnue_forward.1} parent=47 // pred_check_branch
          %944 = sbr.rel (%p942) target = $region52
        $region51: #{nnue_forward.1} parent=47 // pred_region
          %s945 = sand.u32 %s98, 1
          %s946 = scalar_lea.sflag [#allocation4], %s945
          %s947 = sand.u32 %s98, 1
          %s948 = scalar_lea.vmem [#allocation7], %s947
          %949 = dma.done %s946, 16
        $region52: #{nnue_forward.1} parent=47 // pred_fallthru
          _
      $region48: #{nnue_forward.1} parent=5 // pred_fallthru
        _
    $region6: #{nnue_forward.1} parent=1 // loop_footer
      %s20 = sadd.s32 1, %s16
    $region7: #{nnue_forward.1} parent=1 // loop_footer_branch
      %15 = sbr.rel target = $region3
    $region8: #{nnue_forward.1} parent=1 // loop_exit
      _
    %950 = vsyncpa [#allocation3], 1
    %s951 = scalar_lea.sflag [#allocation3], 1
    %952 = vsyncpa %s951, 1
    %953 = vsyncpa [#allocation6], 1
    %954 = vsyncpa [#allocation4], 1
    %s955 = scalar_lea.sflag [#allocation4], 1
    %956 = vsyncpa %s955, 1

</llo_original>
